<compile_context>
chip_gen: v7x
topology: tpu7x:2x2x1
jax: 0.10.0
libtpu: 0.0.40
codegen_flags: <defaults>
</compile_context>

<pallas_src>
import functools

import jax
import jax.numpy as jnp
from jax.experimental import pallas as pl
from jax.experimental.pallas import tpu as pltpu

_LANES = 128           # lane width of each coordinate plane (last block dim)
_ROW_BLOCK_MAX = 1024  # 1024 rows * 128 lanes = 131072 boxes per grid step


def _round_up(x, m):
    return ((x + m - 1) // m) * m


def _fast_recip(x):
    # EUP approximate reciprocal + one Newton-Raphson step (~full f32 accuracy).
    # Keeps the two divides per box off the VALU slot (v7x VALU/HBM co-binding);
    # free-slack filler on v5e/v6e.
    r = pl.reciprocal(x, approx=True)
    return r * (2.0 - x * r)


def _giou_loss_plane(pred_ref, tgt_ref):
    """Dense (r_block, C) GIoU loss from (4, r_block, C) coordinate planes."""
    px1, py1, px2, py2 = pred_ref[0], pred_ref[1], pred_ref[2], pred_ref[3]
    tx1, ty1, tx2, ty2 = tgt_ref[0], tgt_ref[1], tgt_ref[2], tgt_ref[3]

    inter_w = jnp.maximum(jnp.minimum(px2, tx2) - jnp.maximum(px1, tx1), 0.0)
    inter_h = jnp.maximum(jnp.minimum(py2, ty2) - jnp.maximum(py1, ty1), 0.0)
    inter = inter_w * inter_h

    area_p = (px2 - px1) * (py2 - py1)
    area_t = (tx2 - tx1) * (ty2 - ty1)
    union = area_p + area_t - inter

    c_w = jnp.maximum(px2, tx2) - jnp.minimum(px1, tx1)
    c_h = jnp.maximum(py2, ty2) - jnp.minimum(py1, ty1)
    c_area = c_w * c_h

    # giou = iou - (c_area - union)/c_area  ==>  1 - giou = 2 - iou - union/c_area
    # TODO(synk): no epsilon guard on the reciprocals, matching box_ops.giou_score
    # (degenerate zero-area unions / enclosing boxes give NaN/Inf as in the spec).
    return 2.0 - inter * _fast_recip(union) - union * _fast_recip(c_area)


def _giou_none_kernel(pred_ref, tgt_ref, out_ref):
    # pred_ref/tgt_ref: (4, r_block, C); out_ref: (r_block, C) lane-dense plane.
    out_ref[...] = _giou_loss_plane(pred_ref, tgt_ref)


def _make_partial_sum_kernel(M, r_block, C, needs_mask):
    def kernel(pred_ref, tgt_ref, out_ref):
        loss = _giou_loss_plane(pred_ref, tgt_ref)            # (r_block, C)
        if needs_mask:
            # Mask the padded / ragged tail instead of padding HBM with unit boxes.
            row0 = pl.program_id(0) * r_block
            rows = jax.lax.broadcasted_iota(jnp.int32, (r_block, C), 0)
            cols = jax.lax.broadcasted_iota(jnp.int32, (r_block, C), 1)
            flat = (row0 + rows) * C + cols
            loss = jnp.where(flat < M, loss, 0.0)
        # (r_block, C) -> (r_block//8, 8, C) regroups whole vregs (free); summing
        # over axis 0 is pure VPU adds -- no XLU cross-lane reduce and no
        # loop-carried scalar RMW, so the reduction overlaps fully with DMA.
        out_ref[...] = jnp.sum(loss.reshape(-1, 8, C), axis=0)
    return kernel


def _giou_from_planes(p, t, batch_size, reduction):
    """Core implementation. p, t: (4, M) float32 planar (SoA) coordinate arrays."""
    assert p.shape == t.shape and p.shape[0] == 4
    M = p.shape[1]
    C = _LANES
    R = _round_up(pl.cdiv(M, C), 8)       # rows padded to a sublane multiple only
    Mp = R * C

    if Mp != M:
        # Single pad pass (fuses with the producing transpose of the (...,4)
        # entry point under jit).  No unit boxes: the tail is masked in-kernel
        # for 'sum'/'mean' and sliced off for 'none'.
        p = jnp.pad(p, ((0, 0), (0, Mp - M)))
        t = jnp.pad(t, ((0, 0), (0, Mp - M)))
    p = p.reshape(4, R, C)
    t = t.reshape(4, R, C)

    r_block = min(_ROW_BLOCK_MAX, R)
    n_blocks = pl.cdiv(R, r_block)
    if n_blocks == 1 and R >= 16:
        # Keep >= 2 grid steps so multi-TensorCore chips (v7x 2xTC, v4/v5p
        # megacore) can shard the "parallel" axis.  On single-core v5e/v6e this
        # costs only one extra ~0.35us grid step (block size unchanged for large
        # inputs), which is why it is not gated behind a brittle chip query.
        r_block = _round_up(pl.cdiv(R, 2), 8)
        n_blocks = pl.cdiv(R, r_block)

    in_specs = [
        pl.BlockSpec((4, r_block, C), lambda i: (0, i, 0)),
        pl.BlockSpec((4, r_block, C), lambda i: (0, i, 0)),
    ]
    cparams = pltpu.CompilerParams(
        dimension_semantics=("parallel",),
        vmem_limit_bytes=32 * 1024 * 1024,
    )

    if reduction == "none":
        out = pl.pallas_call(
            _giou_none_kernel,
            out_shape=jax.ShapeDtypeStruct((R, C), jnp.float32),
            grid=(n_blocks,),
            in_specs=in_specs,
            out_specs=pl.BlockSpec((r_block, C), lambda i: (i, 0)),
            compiler_params=cparams,
        )(p, t)
        if Mp == M:
            return out.reshape(batch_size, -1)   # free reshape, no repack copy
        # TODO(synk): padded tail costs one ~8 B/box repack slice; callers that
        # keep B*N a multiple of 1024 (or use general_iou_loss_planar) avoid it.
        return out.reshape(-1)[:M].reshape(batch_size, -1)

    if reduction not in ("sum", "mean"):
        raise ValueError(f"unknown reduction: {reduction!r}")

    # 'sum'/'mean': each grid step writes an independent (8, C) partial sum under
    # a fully "parallel" grid (megacore / 2-TC shardable); the loss vector never
    # round-trips to HBM and the final reduce runs on a tiny (n_blocks*8, C) array.
    needs_mask = (n_blocks * r_block * C) != M
    partials = pl.pallas_call(
        _make_partial_sum_kernel(M, r_block, C, needs_mask),
        out_shape=jax.ShapeDtypeStruct((n_blocks * 8, C), jnp.float32),
        grid=(n_blocks,),
        in_specs=in_specs,
        out_specs=pl.BlockSpec((8, C), lambda i: (i, 0)),
        compiler_params=cparams,
    )(p, t)
    total = jnp.sum(partials)
    if reduction == "mean":
        # NOTE: matches the PyTorch module: mean == sum / batch_size (not /(B*N)).
        return total / batch_size
    return total


@functools.partial(jax.jit, static_argnames=("reduction",))
def general_iou_loss(pred_boxes, target_boxes, reduction="none"):
    """GIoU loss matching GeneralIoULoss.forward.

    pred_boxes / target_boxes: (B, N, 4) boxes in (x1, y1, x2, y2).
    Returns (B, N) for reduction='none', a scalar for 'sum'/'mean'
    (mean == sum / B, exactly as in the PyTorch module).
    """
    assert pred_boxes.shape == target_boxes.shape
    assert pred_boxes.shape[-1] == 4
    B = pred_boxes.shape[0]
    # (..., 4) -> (4, M) planar; the transpose is the single unavoidable layout
    # pass for this contract and fuses with the pad in _giou_from_planes under jit.
    p = pred_boxes.reshape(-1, 4).astype(jnp.float32).T
    t = target_boxes.reshape(-1, 4).astype(jnp.float32).T
    return _giou_from_planes(p, t, B, reduction)


@functools.partial(jax.jit, static_argnames=("reduction", "batch_size"))
def general_iou_loss_planar(pred_xyxy, target_xyxy, reduction="none", batch_size=1):
    """Zero-layout-copy entry point: boxes supplied as (4, M) planar/SoA coordinate
    arrays (x1, y1, x2, y2 stacked on axis 0).  When M is a multiple of 1024 the
    kernel streams the inputs straight from HBM with no wrapper-side copies."""
    return _giou_from_planes(pred_xyxy.astype(jnp.float32),
                             target_xyxy.astype(jnp.float32),
                             batch_size, reduction)


def _giou_loss_ref(pred_boxes, target_boxes):
    """Pure-JAX reference (mirrors box_ops.giou_score elementwise, exact divides)."""
    p = pred_boxes.reshape(-1, 4).astype(jnp.float32)
    t = target_boxes.reshape(-1, 4).astype(jnp.float32)
    ix1 = jnp.maximum(p[:, 0], t[:, 0]); iy1 = jnp.maximum(p[:, 1], t[:, 1])
    ix2 = jnp.minimum(p[:, 2], t[:, 2]); iy2 = jnp.minimum(p[:, 3], t[:, 3])
    inter = jnp.maximum(ix2 - ix1, 0.0) * jnp.maximum(iy2 - iy1, 0.0)
    area_p = (p[:, 2] - p[:, 0]) * (p[:, 3] - p[:, 1])
    area_t = (t[:, 2] - t[:, 0]) * (t[:, 3] - t[:, 1])
    union = area_p + area_t - inter
    iou = inter / union
    cx1 = jnp.minimum(p[:, 0], t[:, 0]); cy1 = jnp.minimum(p[:, 1], t[:, 1])
    cx2 = jnp.maximum(p[:, 2], t[:, 2]); cy2 = jnp.maximum(p[:, 3], t[:, 3])
    c_area = (cx2 - cx1) * (cy2 - cy1)
    giou = iou - (c_area - union) / c_area
    return (1.0 - giou).reshape(pred_boxes.shape[0], -1)


def _make_boxes(key, B, N):
    """Random valid normalized (x1, y1, x2, y2) boxes."""
    k1, k2 = jax.random.split(key)
    cxcy = jax.random.uniform(k1, (B, N, 2), minval=0.2, maxval=0.8)
    wh = jax.random.uniform(k2, (B, N, 2), minval=0.05, maxval=0.3)
    return jnp.concatenate([cxcy - 0.5 * wh, cxcy + 0.5 * wh], axis=-1).astype(jnp.float32)


if __name__ == "__main__":
    root = jax.random.PRNGKey(0)

    def check(B, N):
        kp, kt = jax.random.split(jax.random.fold_in(root, N))
        pred_box = _make_boxes(kp, B, N)
        target_box = _make_boxes(kt, B, N)
        ref = _giou_loss_ref(pred_box, target_box)

        loss_none = jax.block_until_ready(
            general_iou_loss(pred_box, target_box, reduction="none"))
        assert loss_none.shape == (B, N)
        assert jnp.allclose(loss_none, ref, atol=5e-4, rtol=5e-4), (B, N, "none")

        loss_sum = jax.block_until_ready(
            general_iou_loss(pred_box, target_box, reduction="sum"))
        loss_mean = jax.block_until_ready(
            general_iou_loss(pred_box, target_box, reduction="mean"))
        assert jnp.allclose(loss_sum, ref.sum(), atol=1e-2, rtol=5e-4), (B, N, "sum")
        assert jnp.allclose(loss_mean, ref.sum() / B, atol=1e-2, rtol=5e-4), (B, N, "mean")

    check(2, 64)    # single exact (8,128) block, no padding
    check(2, 300)   # padded tail -> in-kernel mask on the 'sum'/'mean' path
    check(2, 1200)  # 2 parallel blocks, ragged last block + tail mask

    # planar / SoA entry point (zero wrapper copies when M % 1024 == 0)
    kp, kt = jax.random.split(root)
    pb, tb = _make_boxes(kp, 2, 64), _make_boxes(kt, 2, 64)
    planar = jax.block_until_ready(
        general_iou_loss_planar(pb.reshape(-1, 4).T, tb.reshape(-1, 4).T,
                                reduction="none", batch_size=2))
    assert jnp.allclose(planar, _giou_loss_ref(pb, tb), atol=5e-4, rtol=5e-4), "planar"

    print("KERNEL_OK")
</pallas_src>

<mosaic_0001>
module attributes {stable_mosaic.version = 11 : i64} {
  func.func @_giou_none_kernel(%arg0: i32, %arg1: memref<4x8x128xf32, #tpu.memory_space<vmem>>, %arg2: memref<4x8x128xf32, #tpu.memory_space<vmem>>, %arg3: memref<8x128xf32, #tpu.memory_space<vmem>>) attributes {dimension_semantics = [#tpu.dimension_semantics<parallel>], iteration_bounds = array<i64: 1>, scalar_prefetch = 0 : i64, scratch_operands = 0 : i64, tpu.core_type = #tpu.core_type<tc>, window_params = [{transform_indices = @transform_0, window_bounds = array<i64: 4, 8, 128>}, {transform_indices = @transform_1, window_bounds = array<i64: 4, 8, 128>}, {transform_indices = @transform_2, window_bounds = array<i64: 8, 128>}]} {
    %c0 = arith.constant 0 : index
    %c0_0 = arith.constant 0 : index
    %c0_1 = arith.constant 0 : index
    %0 = vector.load %arg1[%c0, %c0_0, %c0_1] : memref<4x8x128xf32, #tpu.memory_space<vmem>>, vector<1x8x128xf32>
    %1 = vector.shape_cast %0 : vector<1x8x128xf32> to vector<8x128xf32>
    %c1 = arith.constant 1 : index
    %c0_2 = arith.constant 0 : index
    %c0_3 = arith.constant 0 : index
    %2 = vector.load %arg1[%c1, %c0_2, %c0_3] : memref<4x8x128xf32, #tpu.memory_space<vmem>>, vector<1x8x128xf32>
    %3 = vector.shape_cast %2 : vector<1x8x128xf32> to vector<8x128xf32>
    %c2 = arith.constant 2 : index
    %c0_4 = arith.constant 0 : index
    %c0_5 = arith.constant 0 : index
    %4 = vector.load %arg1[%c2, %c0_4, %c0_5] : memref<4x8x128xf32, #tpu.memory_space<vmem>>, vector<1x8x128xf32>
    %5 = vector.shape_cast %4 : vector<1x8x128xf32> to vector<8x128xf32>
    %c3 = arith.constant 3 : index
    %c0_6 = arith.constant 0 : index
    %c0_7 = arith.constant 0 : index
    %6 = vector.load %arg1[%c3, %c0_6, %c0_7] : memref<4x8x128xf32, #tpu.memory_space<vmem>>, vector<1x8x128xf32>
    %7 = vector.shape_cast %6 : vector<1x8x128xf32> to vector<8x128xf32>
    %c0_8 = arith.constant 0 : index
    %c0_9 = arith.constant 0 : index
    %c0_10 = arith.constant 0 : index
    %8 = vector.load %arg2[%c0_8, %c0_9, %c0_10] : memref<4x8x128xf32, #tpu.memory_space<vmem>>, vector<1x8x128xf32>
    %9 = vector.shape_cast %8 : vector<1x8x128xf32> to vector<8x128xf32>
    %c1_11 = arith.constant 1 : index
    %c0_12 = arith.constant 0 : index
    %c0_13 = arith.constant 0 : index
    %10 = vector.load %arg2[%c1_11, %c0_12, %c0_13] : memref<4x8x128xf32, #tpu.memory_space<vmem>>, vector<1x8x128xf32>
    %11 = vector.shape_cast %10 : vector<1x8x128xf32> to vector<8x128xf32>
    %c2_14 = arith.constant 2 : index
    %c0_15 = arith.constant 0 : index
    %c0_16 = arith.constant 0 : index
    %12 = vector.load %arg2[%c2_14, %c0_15, %c0_16] : memref<4x8x128xf32, #tpu.memory_space<vmem>>, vector<1x8x128xf32>
    %13 = vector.shape_cast %12 : vector<1x8x128xf32> to vector<8x128xf32>
    %c3_17 = arith.constant 3 : index
    %c0_18 = arith.constant 0 : index
    %c0_19 = arith.constant 0 : index
    %14 = vector.load %arg2[%c3_17, %c0_18, %c0_19] : memref<4x8x128xf32, #tpu.memory_space<vmem>>, vector<1x8x128xf32>
    %15 = vector.shape_cast %14 : vector<1x8x128xf32> to vector<8x128xf32>
    %16 = arith.minimumf %5, %13 : vector<8x128xf32>
    %17 = arith.maximumf %1, %9 : vector<8x128xf32>
    %18 = arith.subf %16, %17 : vector<8x128xf32>
    %cst = arith.constant 0.000000e+00 : f32
    %19 = vector.broadcast %cst : f32 to vector<8x128xf32>
    %20 = arith.maximumf %18, %19 : vector<8x128xf32>
    %21 = arith.minimumf %7, %15 : vector<8x128xf32>
    %22 = arith.maximumf %3, %11 : vector<8x128xf32>
    %23 = arith.subf %21, %22 : vector<8x128xf32>
    %cst_20 = arith.constant 0.000000e+00 : f32
    %24 = vector.broadcast %cst_20 : f32 to vector<8x128xf32>
    %25 = arith.maximumf %23, %24 : vector<8x128xf32>
    %26 = arith.mulf %20, %25 : vector<8x128xf32>
    %27 = arith.subf %5, %1 : vector<8x128xf32>
    %28 = arith.subf %7, %3 : vector<8x128xf32>
    %29 = arith.mulf %27, %28 : vector<8x128xf32>
    %30 = arith.subf %13, %9 : vector<8x128xf32>
    %31 = arith.subf %15, %11 : vector<8x128xf32>
    %32 = arith.mulf %30, %31 : vector<8x128xf32>
    %33 = arith.addf %29, %32 : vector<8x128xf32>
    %34 = arith.subf %33, %26 : vector<8x128xf32>
    %35 = arith.maximumf %5, %13 : vector<8x128xf32>
    %36 = arith.minimumf %1, %9 : vector<8x128xf32>
    %37 = arith.subf %35, %36 : vector<8x128xf32>
    %38 = arith.maximumf %7, %15 : vector<8x128xf32>
    %39 = arith.minimumf %3, %11 : vector<8x128xf32>
    %40 = arith.subf %38, %39 : vector<8x128xf32>
    %41 = arith.mulf %37, %40 : vector<8x128xf32>
    %42 = tpu.reciprocal %34 {approx = true} : vector<8x128xf32> -> vector<8x128xf32>
    %43 = arith.mulf %34, %42 : vector<8x128xf32>
    %cst_21 = arith.constant 2.000000e+00 : f32
    %44 = vector.broadcast %cst_21 : f32 to vector<8x128xf32>
    %45 = arith.subf %44, %43 : vector<8x128xf32>
    %46 = arith.mulf %42, %45 : vector<8x128xf32>
    %47 = arith.mulf %26, %46 : vector<8x128xf32>
    %cst_22 = arith.constant 2.000000e+00 : f32
    %48 = vector.broadcast %cst_22 : f32 to vector<8x128xf32>
    %49 = arith.subf %48, %47 : vector<8x128xf32>
    %50 = tpu.reciprocal %41 {approx = true} : vector<8x128xf32> -> vector<8x128xf32>
    %51 = arith.mulf %41, %50 : vector<8x128xf32>
    %cst_23 = arith.constant 2.000000e+00 : f32
    %52 = vector.broadcast %cst_23 : f32 to vector<8x128xf32>
    %53 = arith.subf %52, %51 : vector<8x128xf32>
    %54 = arith.mulf %50, %53 : vector<8x128xf32>
    %55 = arith.mulf %34, %54 : vector<8x128xf32>
    %56 = arith.subf %49, %55 : vector<8x128xf32>
    %c0_24 = arith.constant 0 : index
    %c0_25 = arith.constant 0 : index
    %57 = vector.load %arg3[%c0_24, %c0_25] : memref<8x128xf32, #tpu.memory_space<vmem>>, vector<8x128xf32>
    tpu.vector_store %arg3[%c0_24, %c0_25], %56 {strides = array<i32>} : memref<8x128xf32, #tpu.memory_space<vmem>>, vector<8x128xf32>,
    return
  }
  func.func @transform_0(%arg0: i32) -> (i32, i32, i32) {
    %c0_i32 = arith.constant 0 : i32
    %c0_i32_0 = arith.constant 0 : i32
    %c0_i32_1 = arith.constant 0 : i32
    return %c0_i32, %arg0, %c0_i32_0 : i32, i32, i32
  }
  func.func @transform_1(%arg0: i32) -> (i32, i32, i32) {
    %c0_i32 = arith.constant 0 : i32
    %c0_i32_0 = arith.constant 0 : i32
    %c0_i32_1 = arith.constant 0 : i32
    return %c0_i32, %arg0, %c0_i32_0 : i32, i32, i32
  }
  func.func @transform_2(%arg0: i32) -> (i32, i32) {
    %c0_i32 = arith.constant 0 : i32
    %c0_i32_0 = arith.constant 0 : i32
    return %arg0, %c0_i32 : i32, i32
  }
}

</mosaic_0001>

<llo_original>
// kernel: general_iou_loss.1
$region0: #{general_iou_loss.1}
  #allocation0 [shape = 'u32[]', space=smem, size = 0x4, offset = 0x4, fixed_abs, tag = 'smem constant byte address 0x4 - core index']
  #allocation1 [shape = 'u32[144,128]{1,0:T(1,128)}', space=vmem, size = 0x12000, scoped, tag = 'internal scratch']
  %s0 = inlined_call_operand.vmem [shape: f32[4,8,128], index: 0, kind: input, shape index: {}]
  %s1 = inlined_call_operand.vmem [shape: f32[4,8,128], index: 1, kind: input, shape index: {}]
  %s2 = inlined_call_operand.vmem [shape: f32[8,128], index: 2, kind: output, shape index: {}]
  %s3 = sld [smem:[#allocation0]]
  $region18: #{general_iou_loss.1} parent=0
    _
  %s5 = ssub.s32 1, %s3
  %s6 = scalar_select 0, %s5, %s3
  // Predicated region
  $region2: #{general_iou_loss.1} parent=0 // pred_check
    _
  $region3: #{general_iou_loss.1} parent=0 // pred_check_branch
    %8 = sbr.rel (0) target = $region5
  $region4: #{general_iou_loss.1} parent=0 // pred_region
    _
  $region5: #{general_iou_loss.1} parent=0 // pred_fallthru
    _
  // Predicated region
  $region6: #{general_iou_loss.1} parent=0 // pred_check
    _
  $region7: #{general_iou_loss.1} parent=0 // pred_check_branch
    %10 = sbr.rel (0) target = $region9
  $region8: #{general_iou_loss.1} parent=0 // pred_region
    _
  $region9: #{general_iou_loss.1} parent=0 // pred_fallthru
    _
  %v11 = vld [vmem:[%s0] sm:$0xff]
  %s12 = scalar_lea.vmem %s0, 8
  %v13 = vld [vmem:[%s12] sm:$0xff]
  %s14 = scalar_lea.vmem %s0, 16
  %v15 = vld [vmem:[%s14] sm:$0xff]
  %s16 = scalar_lea.vmem %s0, 24
  %v17 = vld [vmem:[%s16] sm:$0xff]
  %v18 = vld [vmem:[%s1] sm:$0xff]
  %s19 = scalar_lea.vmem %s1, 8
  %v20 = vld [vmem:[%s19] sm:$0xff]
  %s21 = scalar_lea.vmem %s1, 16
  %v22 = vld [vmem:[%s21] sm:$0xff]
  %s23 = scalar_lea.vmem %s1, 24
  %v24 = vld [vmem:[%s23] sm:$0xff]
  %v25 = vmin.f32 %v15, %v22
  %v26 = vmax.f32 %v11, %v18
  %v27 = vsub.f32 %v25, %v26
  %v28 = vmax.f32 %v27, 0.0
  %v29 = vmin.f32 %v17, %v24
  %v30 = vmax.f32 %v13, %v20
  %v31 = vsub.f32 %v29, %v30
  %v32 = vmax.f32 %v31, 0.0
  %v33 = vmul.f32 %v28, %v32
  %v34 = vsub.f32 %v15, %v11
  %v35 = vsub.f32 %v17, %v13
  %v36 = vmul.f32 %v34, %v35
  %v37 = vsub.f32 %v22, %v18
  %v38 = vsub.f32 %v24, %v20
  %v39 = vmul.f32 %v37, %v38
  %v40 = vadd.f32 %v36, %v39
  %v41 = vsub.f32 %v40, %v33
  %v42 = vmax.f32 %v15, %v22
  %v43 = vmin.f32 %v11, %v18
  %v44 = vsub.f32 %v42, %v43
  %v45 = vmax.f32 %v17, %v24
  %v46 = vmin.f32 %v13, %v20
  %v47 = vsub.f32 %v45, %v46
  %v48 = vmul.f32 %v44, %v47
  %v49 = vrcp.pop %v41
  %v50 = vmul.f32 %v41, %v49
  %v51 = vsub.f32 2.0, %v50
  %v52 = vmul.f32 %v49, %v51
  %v53 = vmul.f32 %v33, %v52
  %v54 = vsub.f32 2.0, %v53
  %v55 = vrcp.pop %v48
  %v56 = vmul.f32 %v48, %v55
  %v57 = vsub.f32 2.0, %v56
  %v58 = vmul.f32 %v55, %v57
  %v59 = vmul.f32 %v41, %v58
  %v60 = vsub.f32 %v54, %v59
  %61 = vst [vmem:[%s2] sm:$0xff] %v60
  // Predicated region
  $region10: #{general_iou_loss.1} parent=0 // pred_check
    _
  $region11: #{general_iou_loss.1} parent=0 // pred_check_branch
    %63 = sbr.rel (0) target = $region13
  $region12: #{general_iou_loss.1} parent=0 // pred_region
    _
  $region13: #{general_iou_loss.1} parent=0 // pred_fallthru
    _
  // Predicated region
  $region14: #{general_iou_loss.1} parent=0 // pred_check
    _
  $region15: #{general_iou_loss.1} parent=0 // pred_check_branch
    %65 = sbr.rel (0) target = $region17
  $region16: #{general_iou_loss.1} parent=0 // pred_region
    _
  $region17: #{general_iou_loss.1} parent=0 // pred_fallthru
    _

</llo_original>
